<compile_context>
chip_gen: v6e
topology: v6e:2x2x1
jax: 0.10.0
libtpu: 0.0.40
codegen_flags: <defaults>
</compile_context>

<pallas_src>
import jax
import jax.numpy as jnp
from jax import lax
from jax.experimental import pallas as pl
from jax.experimental.pallas import tpu as pltpu

_MIB = 1024 * 1024


# ------------------------------ VMEM policy ----------------------------------

def _physical_vmem_bytes():
    """Physical VMEM per TensorCore; conservative fallback if unqueryable."""
    try:
        return int(pltpu.get_tpu_info().vmem_capacity_bytes)
    except Exception:
        return 64 * _MIB  # v7x per-core VMEM = smallest of v5e/v6e/v7x


def _vmem_limit(estimate_bytes, physical_bytes):
    """Scoped-VMEM limit: need + headroom, never below default, never > ~85% physical."""
    return int(max(32 * _MIB,
                   min(2 * estimate_bytes + 4 * _MIB, int(0.85 * physical_bytes))))


# ------------------------------ fused kernel ---------------------------------

def _make_fused_kernel(num_edges, n_batch, eps):
    """ONE grid step: concat + 1x1 conv + BN (centered variance) for the whole batch.

    Ref order: (w, x_0, ..., x_{E-1}, out)
      w   : (Cout, E*C)    compute dtype
      x_e : (N, C, HW)     compute dtype
      out : (N, Cout, HW)  output dtype
    """

    def kernel(*refs):
        w_ref = refs[0]
        x_refs = refs[1:1 + num_edges]
        out_ref = refs[1 + num_edges]

        w = w_ref[...]

        # concat along channels in VMEM + one K=E*C MXU matmul per batch element
        ys = []
        for n in range(n_batch):
            xcat = jnp.concatenate([x_refs[e][n] for e in range(num_edges)],
                                   axis=0)                      # (E*C, HW)
            ys.append(jnp.dot(w, xcat,
                              preferred_element_type=jnp.float32))  # (Cout, HW) f32

        hw = ys[0].shape[1]
        inv_cnt = 1.0 / float(n_batch * hw)

        # BatchNorm training statistics, centered (two-pass) variance, all f32.
        s = jnp.sum(ys[0], axis=1, keepdims=True)
        for n in range(1, n_batch):
            s = s + jnp.sum(ys[n], axis=1, keepdims=True)
        mean = s * inv_cnt                                       # (Cout, 1)

        devs = [y - mean for y in ys]
        q = jnp.sum(devs[0] * devs[0], axis=1, keepdims=True)
        for n in range(1, n_batch):
            q = q + jnp.sum(devs[n] * devs[n], axis=1, keepdims=True)
        var = q * inv_cnt
        inv_std = lax.rsqrt(var + eps)                           # EUP

        for n in range(n_batch):
            out_ref[n] = (devs[n] * inv_std).astype(out_ref.dtype)

    return kernel


# --------------------------- streaming fallback -------------------------------

def _make_stream_conv_kernel(num_edges, nb_block, cout):
    """Grid step over a batch chunk: concat + conv, write y, accumulate BN stats.

    Ref order: (w, x_0, ..., x_{E-1}, y, sum, sumsq)
    sum/sumsq are (Cout, 1) f32 outputs with a CONSTANT block index -> resident
    in VMEM across the grid (grid axis must be "arbitrary").
    """

    def kernel(*refs):
        w_ref = refs[0]
        x_refs = refs[1:1 + num_edges]
        y_ref = refs[1 + num_edges]
        sum_ref = refs[2 + num_edges]
        sq_ref = refs[3 + num_edges]

        @pl.when(pl.program_id(0) == 0)
        def _():
            sum_ref[...] = jnp.zeros((cout, 1), jnp.float32)
            sq_ref[...] = jnp.zeros((cout, 1), jnp.float32)

        w = w_ref[...]
        s = jnp.zeros((cout, 1), jnp.float32)
        q = jnp.zeros((cout, 1), jnp.float32)
        for n in range(nb_block):
            xcat = jnp.concatenate([x_refs[e][n] for e in range(num_edges)],
                                   axis=0)                      # (E*C, HW)
            y = jnp.dot(w, xcat, preferred_element_type=jnp.float32)  # (Cout, HW)
            y_ref[n] = y.astype(y_ref.dtype)
            s = s + jnp.sum(y, axis=1, keepdims=True)
            q = q + jnp.sum(y * y, axis=1, keepdims=True)
        sum_ref[...] += s
        sq_ref[...] += q

    return kernel


def _stream_norm_kernel(scale_ref, shift_ref, y_ref, o_ref):
    """Grid step over a batch chunk: o = y * scale - shift (per output channel)."""
    y = y_ref[...].astype(jnp.float32)                           # (Nb, Cout, HW)
    o_ref[...] = (y * scale_ref[...][None]
                  - shift_ref[...][None]).astype(o_ref.dtype)


# -------------------------------- wrapper -------------------------------------

def concat1x1_forward(xs, conv_weight, *, eps=1e-5, max_unrolled_batch=8,
                      force_streaming=False, block_batch=None):
    """Concat1x1 forward (channel concat -> 1x1 conv (no bias) -> BN, affine=False,
    training-mode batch statistics).

    xs          : list of `num_in_edges` tensors, each [N, C, H, W] (NCHW)
    conv_weight : Conv2d weight [C_out, num_in_edges*C, 1, 1] (OIHW)
    Returns       [N, C_out, H, W] in the input dtype.
    """
    num_edges = len(xs)
    N, C, H, W = xs[0].shape
    Cout = conv_weight.shape[0]
    assert conv_weight.shape[1] == num_edges * C, "weight/input channel mismatch"
    HW = H * W

    x_dtype = xs[0].dtype
    out_dtype = x_dtype
    xbytes = jnp.dtype(x_dtype).itemsize
    obytes = jnp.dtype(out_dtype).itemsize

    # Free (contiguous) reshapes; lane dim = H*W. NO dtype upcast here.
    xs_flat = [x.reshape(N, C, HW) for x in xs]
    w = conv_weight.reshape(Cout, num_edges * C).astype(x_dtype)  # tiny

    physical = _physical_vmem_bytes()
    budget = int(0.70 * physical)   # residency budget re-derived per chip (~45 MiB on v7x)

    def per_chunk_vmem(nb):
        in_b = 2 * num_edges * nb * C * HW * xbytes               # double-buffered inputs
        out_b = 2 * nb * Cout * HW * obytes
        tmp = nb * (num_edges * C * HW * xbytes + 3 * Cout * HW * 4)
        return in_b + out_b + Cout * num_edges * C * xbytes + tmp + 2 * _MIB

    use_fused = (not force_streaming
                 and N <= max_unrolled_batch
                 and per_chunk_vmem(N) <= budget)

    if use_fused:
        est = per_chunk_vmem(N)
        out = pl.pallas_call(
            _make_fused_kernel(num_edges, N, eps),
            out_shape=jax.ShapeDtypeStruct((N, Cout, HW), out_dtype),
            grid=(1,),
            in_specs=[pl.BlockSpec((Cout, num_edges * C), lambda i: (0, 0))]
            + [pl.BlockSpec((N, C, HW), lambda i: (0, 0, 0))
               for _ in range(num_edges)],
            out_specs=pl.BlockSpec((N, Cout, HW), lambda i: (0, 0, 0)),
            compiler_params=pltpu.CompilerParams(
                dimension_semantics=("arbitrary",),
                vmem_limit_bytes=_vmem_limit(est, physical)),
        )(w, *xs_flat)
        return out.reshape(N, Cout, H, W)

    # ---------------- streaming two-pass path (large activations) ------------
    if block_batch is not None:
        nb = int(block_batch)
        assert N % nb == 0, "block_batch must divide N"
    else:
        nb = 1
        for cand in range(min(N, max_unrolled_batch), 0, -1):
            if N % cand == 0 and per_chunk_vmem(cand) <= budget:
                nb = cand
                break
    n_steps = N // nb

    # Pass 1: streamed conv + per-channel (sum, sumsq) accumulation.
    est1 = per_chunk_vmem(nb)
    y, csum, csq = pl.pallas_call(
        _make_stream_conv_kernel(num_edges, nb, Cout),
        out_shape=(jax.ShapeDtypeStruct((N, Cout, HW), out_dtype),
                   jax.ShapeDtypeStruct((Cout, 1), jnp.float32),
                   jax.ShapeDtypeStruct((Cout, 1), jnp.float32)),
        grid=(n_steps,),
        in_specs=[pl.BlockSpec((Cout, num_edges * C), lambda i: (0, 0))]
        + [pl.BlockSpec((nb, C, HW), lambda i: (i, 0, 0))
           for _ in range(num_edges)],
        out_specs=(pl.BlockSpec((nb, Cout, HW), lambda i: (i, 0, 0)),
                   pl.BlockSpec((Cout, 1), lambda i: (0, 0)),
                   pl.BlockSpec((Cout, 1), lambda i: (0, 0))),
        compiler_params=pltpu.CompilerParams(
            dimension_semantics=("arbitrary",),  # stats accumulate across the grid
            vmem_limit_bytes=_vmem_limit(est1, physical)),
    )(w, *xs_flat)

    # Tiny per-channel scale/shift (Cout elements) computed once between passes.
    # One-pass variance (E[y^2]-E[y]^2) in f32; fine for conv activations.
    inv_cnt = 1.0 / float(N * HW)
    mean = csum * inv_cnt
    var = jnp.maximum(csq * inv_cnt - mean * mean, 0.0)
    inv_std = lax.rsqrt(var + eps)
    scale = inv_std                       # (Cout, 1)
    shift = mean * inv_std                # (Cout, 1)

    # Pass 2: streamed normalize; fully parallel grid, writeback overlaps compute.
    est2 = (4 * nb * Cout * HW * obytes + nb * Cout * HW * 4
            + 4 * Cout * 4 + 2 * _MIB)
    out = pl.pallas_call(
        _stream_norm_kernel,
        out_shape=jax.ShapeDtypeStruct((N, Cout, HW), out_dtype),
        grid=(n_steps,),
        in_specs=[pl.BlockSpec((Cout, 1), lambda i: (0, 0)),
                  pl.BlockSpec((Cout, 1), lambda i: (0, 0)),
                  pl.BlockSpec((nb, Cout, HW), lambda i: (i, 0, 0))],
        out_specs=pl.BlockSpec((nb, Cout, HW), lambda i: (i, 0, 0)),
        compiler_params=pltpu.CompilerParams(
            dimension_semantics=("parallel",),
            vmem_limit_bytes=_vmem_limit(est2, physical)),
    )(scale, shift, y)
    return out.reshape(N, Cout, H, W)


# ---------------------------- pure-JAX reference ------------------------------

def _reference(xs, conv_weight, eps=1e-5):
    x = jnp.concatenate(xs, axis=1)                       # [N, E*C, H, W]
    y = lax.conv_general_dilated(
        x, conv_weight, window_strides=(1, 1), padding="VALID",
        dimension_numbers=("NCHW", "OIHW", "NCHW"))
    mean = jnp.mean(y, axis=(0, 2, 3), keepdims=True)
    var = jnp.mean((y - mean) ** 2, axis=(0, 2, 3), keepdims=True)
    return (y - mean) / jnp.sqrt(var + eps)               # affine=False


if __name__ == "__main__":
    key = jax.random.PRNGKey(0)
    k1, k2, k3 = jax.random.split(key, 3)

    # Concat1x1(num_in_edges=2, C_out=8): inputs are 2 edges of [N, C_out, H, W]
    num_in_edges, C_out = 2, 8
    N, H, W = 2, 16, 16

    x0 = jax.random.normal(k1, (N, C_out, H, W), jnp.float32)
    x1 = jax.random.normal(k2, (N, C_out, H, W), jnp.float32)
    weight = jax.random.normal(
        k3, (C_out, num_in_edges * C_out, 1, 1), jnp.float32) * 0.1

    ref = _reference([x0, x1], weight)

    # Fully fused single-step path (default at these sizes).
    out = jax.block_until_ready(concat1x1_forward([x0, x1], weight))
    assert out.shape == (N, C_out, H, W), out.shape
    err = float(jnp.max(jnp.abs(out - ref)))
    if err > 1e-3:
        raise AssertionError(f"fused path mismatch vs reference: max abs err = {err}")

    # Streaming two-pass fallback (exercised here with 1-batch blocks so the
    # cross-step stats accumulation path is actually tested).
    out_s = jax.block_until_ready(
        concat1x1_forward([x0, x1], weight, force_streaming=True, block_batch=1))
    assert out_s.shape == (N, C_out, H, W), out_s.shape
    err_s = float(jnp.max(jnp.abs(out_s - ref)))
    if err_s > 1e-3:
        raise AssertionError(f"streaming path mismatch vs reference: max abs err = {err_s}")

    print("KERNEL_OK")
</pallas_src>

<mosaic_0001>
module attributes {stable_mosaic.version = 11 : i64} {
  func.func @kernel(%arg0: i32, %arg1: memref<8x16xf32, #tpu.memory_space<vmem>>, %arg2: memref<2x8x256xf32, #tpu.memory_space<vmem>>, %arg3: memref<2x8x256xf32, #tpu.memory_space<vmem>>, %arg4: memref<2x8x256xf32, #tpu.memory_space<vmem>>) attributes {dimension_semantics = [#tpu.dimension_semantics<arbitrary>], iteration_bounds = array<i64: 1>, scalar_prefetch = 0 : i64, scratch_operands = 0 : i64, tpu.core_type = #tpu.core_type<tc>, window_params = [{pipeline_mode = #tpu.pipeline_mode<synchronous>, transform_indices = @transform_0, window_bounds = array<i64: 8, 16>}, {pipeline_mode = #tpu.pipeline_mode<synchronous>, transform_indices = @transform_1, window_bounds = array<i64: 2, 8, 256>}, {pipeline_mode = #tpu.pipeline_mode<synchronous>, transform_indices = @transform_2, window_bounds = array<i64: 2, 8, 256>}, {pipeline_mode = #tpu.pipeline_mode<synchronous>, transform_indices = @transform_3, window_bounds = array<i64: 2, 8, 256>}]} {
    %c0 = arith.constant 0 : index
    %c0_0 = arith.constant 0 : index
    %0 = vector.load %arg1[%c0, %c0_0] : memref<8x16xf32, #tpu.memory_space<vmem>>, vector<8x16xf32>
    %c0_1 = arith.constant 0 : index
    %c0_2 = arith.constant 0 : index
    %c0_3 = arith.constant 0 : index
    %1 = vector.load %arg2[%c0_1, %c0_2, %c0_3] : memref<2x8x256xf32, #tpu.memory_space<vmem>>, vector<1x8x256xf32>
    %2 = vector.shape_cast %1 : vector<1x8x256xf32> to vector<8x256xf32>
    %c0_4 = arith.constant 0 : index
    %c0_5 = arith.constant 0 : index
    %c0_6 = arith.constant 0 : index
    %3 = vector.load %arg3[%c0_4, %c0_5, %c0_6] : memref<2x8x256xf32, #tpu.memory_space<vmem>>, vector<1x8x256xf32>
    %4 = vector.shape_cast %3 : vector<1x8x256xf32> to vector<8x256xf32>
    %5 = tpu.concatenate %2, %4 in 0 : vector<8x256xf32>, vector<8x256xf32> -> vector<16x256xf32>
    %cst = arith.constant dense<0.000000e+00> : vector<8x256xf32>
    %6 = tpu.matmul %0, %5, %cst {dimension_numbers = #tpu.dot_dimension_numbers<[1], [0], [0], [1], [0, 0, 1, 1], [], []>} : vector<8x16xf32>, vector<16x256xf32>, vector<8x256xf32> -> vector<8x256xf32>
    %c1 = arith.constant 1 : index
    %c0_7 = arith.constant 0 : index
    %c0_8 = arith.constant 0 : index
    %7 = vector.load %arg2[%c1, %c0_7, %c0_8] : memref<2x8x256xf32, #tpu.memory_space<vmem>>, vector<1x8x256xf32>
    %8 = vector.shape_cast %7 : vector<1x8x256xf32> to vector<8x256xf32>
    %c1_9 = arith.constant 1 : index
    %c0_10 = arith.constant 0 : index
    %c0_11 = arith.constant 0 : index
    %9 = vector.load %arg3[%c1_9, %c0_10, %c0_11] : memref<2x8x256xf32, #tpu.memory_space<vmem>>, vector<1x8x256xf32>
    %10 = vector.shape_cast %9 : vector<1x8x256xf32> to vector<8x256xf32>
    %11 = tpu.concatenate %8, %10 in 0 : vector<8x256xf32>, vector<8x256xf32> -> vector<16x256xf32>
    %cst_12 = arith.constant dense<0.000000e+00> : vector<8x256xf32>
    %12 = tpu.matmul %0, %11, %cst_12 {dimension_numbers = #tpu.dot_dimension_numbers<[1], [0], [0], [1], [0, 0, 1, 1], [], []>} : vector<8x16xf32>, vector<16x256xf32>, vector<8x256xf32> -> vector<8x256xf32>
    %cst_13 = arith.constant dense<0.000000e+00> : vector<8xf32>
    %13 = vector.multi_reduction <add>, %6, %cst_13 [1] : vector<8x256xf32> to vector<8xf32>
    %14 = vector.shape_cast %13 : vector<8xf32> to vector<8x1xf32>
    %cst_14 = arith.constant dense<0.000000e+00> : vector<8xf32>
    %15 = vector.multi_reduction <add>, %12, %cst_14 [1] : vector<8x256xf32> to vector<8xf32>
    %16 = vector.shape_cast %15 : vector<8xf32> to vector<8x1xf32>
    %17 = arith.addf %14, %16 : vector<8x1xf32>
    %cst_15 = arith.constant 0.001953125 : f32
    %18 = vector.broadcast %cst_15 : f32 to vector<8x1xf32>
    %19 = arith.mulf %17, %18 : vector<8x1xf32>
    %20 = vector.broadcast %19 : vector<8x1xf32> to vector<8x256xf32>
    %21 = arith.subf %6, %20 : vector<8x256xf32>
    %22 = vector.broadcast %19 : vector<8x1xf32> to vector<8x256xf32>
    %23 = arith.subf %12, %22 : vector<8x256xf32>
    %24 = arith.mulf %21, %21 : vector<8x256xf32>
    %cst_16 = arith.constant dense<0.000000e+00> : vector<8xf32>
    %25 = vector.multi_reduction <add>, %24, %cst_16 [1] : vector<8x256xf32> to vector<8xf32>
    %26 = vector.shape_cast %25 : vector<8xf32> to vector<8x1xf32>
    %27 = arith.mulf %23, %23 : vector<8x256xf32>
    %cst_17 = arith.constant dense<0.000000e+00> : vector<8xf32>
    %28 = vector.multi_reduction <add>, %27, %cst_17 [1] : vector<8x256xf32> to vector<8xf32>
    %29 = vector.shape_cast %28 : vector<8xf32> to vector<8x1xf32>
    %30 = arith.addf %26, %29 : vector<8x1xf32>
    %cst_18 = arith.constant 0.001953125 : f32
    %31 = vector.broadcast %cst_18 : f32 to vector<8x1xf32>
    %32 = arith.mulf %30, %31 : vector<8x1xf32>
    %cst_19 = arith.constant 9.99999974E-6 : f32
    %33 = vector.broadcast %cst_19 : f32 to vector<8x1xf32>
    %34 = arith.addf %32, %33 : vector<8x1xf32>
    %35 = math.rsqrt %34 : vector<8x1xf32>
    %36 = vector.broadcast %35 : vector<8x1xf32> to vector<8x256xf32>
    %37 = arith.mulf %21, %36 : vector<8x256xf32>
    %c0_20 = arith.constant 0 : index
    %c0_21 = arith.constant 0 : index
    %c0_22 = arith.constant 0 : index
    %38 = vector.load %arg4[%c0_20, %c0_21, %c0_22] : memref<2x8x256xf32, #tpu.memory_space<vmem>>, vector<1x8x256xf32>
    %39 = vector.shape_cast %38 : vector<1x8x256xf32> to vector<8x256xf32>
    %40 = vector.shape_cast %37 : vector<8x256xf32> to vector<1x8x256xf32>
    tpu.vector_store %arg4[%c0_20, %c0_21, %c0_22], %40 {strides = array<i32>} : memref<2x8x256xf32, #tpu.memory_space<vmem>>, vector<1x8x256xf32>,
    %41 = vector.broadcast %35 : vector<8x1xf32> to vector<8x256xf32>
    %42 = arith.mulf %23, %41 : vector<8x256xf32>
    %c1_23 = arith.constant 1 : index
    %c0_24 = arith.constant 0 : index
    %c0_25 = arith.constant 0 : index
    %43 = vector.load %arg4[%c1_23, %c0_24, %c0_25] : memref<2x8x256xf32, #tpu.memory_space<vmem>>, vector<1x8x256xf32>
    %44 = vector.shape_cast %43 : vector<1x8x256xf32> to vector<8x256xf32>
    %45 = vector.shape_cast %42 : vector<8x256xf32> to vector<1x8x256xf32>
    tpu.vector_store %arg4[%c1_23, %c0_24, %c0_25], %45 {strides = array<i32>} : memref<2x8x256xf32, #tpu.memory_space<vmem>>, vector<1x8x256xf32>,
    return
  }
  func.func @transform_0(%arg0: i32) -> (i32, i32) {
    %c0_i32 = arith.constant 0 : i32
    %c0_i32_0 = arith.constant 0 : i32
    %c0_i32_1 = arith.constant 0 : i32
    return %c0_i32, %c0_i32_0 : i32, i32
  }
  func.func @transform_1(%arg0: i32) -> (i32, i32, i32) {
    %c0_i32 = arith.constant 0 : i32
    %c0_i32_0 = arith.constant 0 : i32
    %c0_i32_1 = arith.constant 0 : i32
    %c0_i32_2 = arith.constant 0 : i32
    return %c0_i32, %c0_i32_0, %c0_i32_1 : i32, i32, i32
  }
  func.func @transform_2(%arg0: i32) -> (i32, i32, i32) {
    %c0_i32 = arith.constant 0 : i32
    %c0_i32_0 = arith.constant 0 : i32
    %c0_i32_1 = arith.constant 0 : i32
    %c0_i32_2 = arith.constant 0 : i32
    return %c0_i32, %c0_i32_0, %c0_i32_1 : i32, i32, i32
  }
  func.func @transform_3(%arg0: i32) -> (i32, i32, i32) {
    %c0_i32 = arith.constant 0 : i32
    %c0_i32_0 = arith.constant 0 : i32
    %c0_i32_1 = arith.constant 0 : i32
    %c0_i32_2 = arith.constant 0 : i32
    return %c0_i32, %c0_i32_0, %c0_i32_1 : i32, i32, i32
  }
}

</mosaic_0001>

<llo_original>
// kernel: tpu_custom_call.1
$region0: #{tpu_custom_call.1}
  #allocation0 [shape = 'u32[]', space=smem, size = 0x4, offset = 0x4, fixed_abs, tag = 'smem constant byte address 0x4 - core index']
  #allocation1 [shape = 'u32[144,128]{1,0:T(1,128)}', space=vmem, size = 0x12000, scoped, tag = 'internal scratch']
  %s0 = inlined_call_operand.hbm [shape: f32[8,16], index: 0, kind: input, shape index: {}]
  %s1 = inlined_call_operand.hbm [shape: f32[2,8,256], index: 1, kind: input, shape index: {}]
  %s2 = inlined_call_operand.hbm [shape: f32[2,8,256], index: 2, kind: input, shape index: {}]
  %s3 = inlined_call_operand.hbm [shape: f32[2,8,256], index: 3, kind: output, shape index: {}]
  %s4 = sld [smem:[#allocation0]]
  $region34: #{tpu_custom_call.1} parent=0
    _
  %s6 = ssub.s32 1, %s4
  %s7 = scalar_select 0, %s6, %s4
  $region1: #{tpu_custom_call.1} parent=0
    #allocation2 [shape = 'u8[4096]{0}', space=vmem, size = 0x1000, scoped, tag = 'input window, operand 0, single buffered']
    #allocation3 [shape = 's32[1]{0}', space=sflag, size = 0x4, scoped, tag = 'scoped memory for tpu_custom_call.1']
    #allocation4 [shape = 's32[1]{0}', space=sflag, size = 0x4, scoped, tag = 'scoped memory for tpu_custom_call.1']
    #allocation5 [shape = 'u8[16384]{0}', space=vmem, size = 0x4000, scoped, tag = 'input window, operand 1, single buffered']
    #allocation6 [shape = 's32[1]{0}', space=sflag, size = 0x4, scoped, tag = 'scoped memory for tpu_custom_call.1']
    #allocation7 [shape = 'u8[16384]{0}', space=vmem, size = 0x4000, scoped, tag = 'input window, operand 2, single buffered']
    #allocation8 [shape = 'u8[16384]{0}', space=vmem, size = 0x4000, scoped, tag = 'output window, operand 0, single buffered']
    %8 = vsyncpa [#allocation3], 0
    %9 = vsyncpa [#allocation6], 0
    %10 = vsyncpa [#allocation4], 0
    // Predicated region
    $region2: #{tpu_custom_call.1} parent=1 // pred_check
      _
    $region3: #{tpu_custom_call.1} parent=1 // pred_check_branch
      %12 = sbr.rel (0) target = $region5
    $region4: #{tpu_custom_call.1} parent=1 // pred_region
      %s14 = ssub.s32 128, 128
      %15 = vsyncadd [#allocation3], %s14
      %s17 = sshll.u32 [#allocation2], 4
      %s18 = int_to_ptr.vmem [resolvable:$true] %s17
      %20 = dma.hbm_to_vmem [thread:$0]  %s0, 128, %s18, [#allocation3]
    $region5: #{tpu_custom_call.1} parent=1 // pred_fallthru
      _
    // Predicated region
    $region6: #{tpu_custom_call.1} parent=1 // pred_check
      _
    $region7: #{tpu_custom_call.1} parent=1 // pred_check_branch
      %22 = sbr.rel (0) target = $region9
    $region8: #{tpu_custom_call.1} parent=1 // pred_region
      %s24 = ssub.s32 512, 512
      %25 = vsyncadd [#allocation6], %s24
      %s26 = sshll.u32 [#allocation5], 4
      %s27 = int_to_ptr.vmem [resolvable:$true] %s26
      %32 = dma.hbm_to_vmem [thread:$0]  %s1, 512, %s27, [#allocation6], 256, 256, 16
    $region9: #{tpu_custom_call.1} parent=1 // pred_fallthru
      _
    // Predicated region
    $region10: #{tpu_custom_call.1} parent=1 // pred_check
      _
    $region11: #{tpu_custom_call.1} parent=1 // pred_check_branch
      %34 = sbr.rel (0) target = $region13
    $region12: #{tpu_custom_call.1} parent=1 // pred_region
      %s36 = ssub.s32 512, 512
      %37 = vsyncadd [#allocation6], %s36
      %s38 = sshll.u32 [#allocation7], 4
      %s39 = int_to_ptr.vmem [resolvable:$true] %s38
      %44 = dma.hbm_to_vmem [thread:$0]  %s2, 512, %s39, [#allocation6], 256, 256, 16
    $region13: #{tpu_custom_call.1} parent=1 // pred_fallthru
      _
    // Predicated region
    $region14: #{tpu_custom_call.1} parent=1 // pred_check
      _
    $region15: #{tpu_custom_call.1} parent=1 // pred_check_branch
      %46 = sbr.rel (0) target = $region17
    $region16: #{tpu_custom_call.1} parent=1 // pred_region
      %47 = dma.done [#allocation3], 128
    $region17: #{tpu_custom_call.1} parent=1 // pred_fallthru
      _
    // Predicated region
    $region18: #{tpu_custom_call.1} parent=1 // pred_check
      _
    $region19: #{tpu_custom_call.1} parent=1 // pred_check_branch
      %49 = sbr.rel (0) target = $region21
    $region20: #{tpu_custom_call.1} parent=1 // pred_region
      %50 = dma.done [#allocation6], 512
    $region21: #{tpu_custom_call.1} parent=1 // pred_fallthru
      _
    // Predicated region
    $region22: #{tpu_custom_call.1} parent=1 // pred_check
      _
    $region23: #{tpu_custom_call.1} parent=1 // pred_check_branch
      %52 = sbr.rel (0) target = $region25
    $region24: #{tpu_custom_call.1} parent=1 // pred_region
      %53 = dma.done [#allocation6], 512
    $region25: #{tpu_custom_call.1} parent=1 // pred_fallthru
      _
    %v54 = vld [vmem:[#allocation2] sm:$0xff]
    %v55 = vld [vmem:[#allocation5] sm:$0xff]
    %v56 = vld [vmem:[#allocation5 + $0x8] sm:$0xff]
    %v57 = vld [vmem:[#allocation7] sm:$0xff]
    %v58 = vld [vmem:[#allocation7 + $0x8] sm:$0xff]
    %vm59 = vcmask 130048
    %v61 = vsel %vm59, %v54, 0
    %63 = vmatprep.subr.mxu0 0.0
    %64 = vmatpush1.msra.mxu0 0.0
    %65 = vmatprep.subr.mxu0 0.0
    %66 = vmatpush1.msra.mxu0 0.0
    %67 = vmatprep.subr.mxu0 0.0
    %68 = vmatpush1.msra.mxu0 0.0
    %69 = vmatprep.subr.mxu0 0.0
    %70 = vmatpush1.msra.mxu0 0.0
    %71 = vmatprep.subr.mxu0 0.0
    %72 = vmatpush1.msra.mxu0 0.0
    %73 = vmatprep.subr.mxu0 0.0
    %74 = vmatpush1.msra.mxu0 0.0
    %75 = vmatprep.subr.mxu0 0.0
    %76 = vmatpush1.msra.mxu0 0.0
    %77 = vmatprep.subr.mxu0 0.0
    %78 = vmatpush1.msra.mxu0 0.0
    %79 = vmatprep.subr.mxu0 0.0
    %80 = vmatpush1.msra.mxu0 0.0
    %81 = vmatprep.subr.mxu0 0.0
    %82 = vmatpush1.msra.mxu0 0.0
    %83 = vmatprep.subr.mxu0 0.0
    %84 = vmatpush1.msra.mxu0 0.0
    %85 = vmatprep.subr.mxu0 0.0
    %86 = vmatpush1.msra.mxu0 0.0
    %87 = vmatprep.subr.mxu0 0.0
    %88 = vmatpush1.msra.mxu0 0.0
    %89 = vmatprep.subr.mxu0 0.0
    %90 = vmatpush1.msra.mxu0 0.0
    %91 = vmatprep.subr.mxu0 %v58
    %92 = vmatpush1.msra.mxu0 %v57
    %93 = vmatprep.subr.mxu0 %v56
    %94 = vmatpush1.msra.mxu0 %v55
    %95 = vmatprep.subr.mxu0 0.0
    %96 = vmatpush2.msra.mxu0 0.0
    %97 = vmatprep.subr.mxu0 0.0
    %98 = vmatpush2.msra.mxu0 0.0
    %99 = vmatprep.subr.mxu0 0.0
    %100 = vmatpush2.msra.mxu0 0.0
    %101 = vmatprep.subr.mxu0 0.0
    %102 = vmatpush2.msra.mxu0 0.0
    %103 = vmatprep.subr.mxu0 0.0
    %104 = vmatpush2.msra.mxu0 0.0
    %105 = vmatprep.subr.mxu0 0.0
    %106 = vmatpush2.msra.mxu0 0.0
    %107 = vmatprep.subr.mxu0 0.0
    %108 = vmatpush2.msra.mxu0 0.0
    %109 = vmatprep.subr.mxu0 0.0
    %110 = vmatpush2.msra.mxu0 0.0
    %111 = vmatprep.subr.mxu0 0.0
    %112 = vmatpush2.msra.mxu0 0.0
    %113 = vmatprep.subr.mxu0 0.0
    %114 = vmatpush2.msra.mxu0 0.0
    %115 = vmatprep.subr.mxu0 0.0
    %116 = vmatpush2.msra.mxu0 0.0
    %117 = vmatprep.subr.mxu0 0.0
    %118 = vmatpush2.msra.mxu0 0.0
    %119 = vmatprep.subr.mxu0 0.0
    %120 = vmatpush2.msra.mxu0 0.0
    %121 = vmatprep.subr.mxu0 0.0
    %122 = vmatpush2.msra.mxu0 0.0
    %123 = vmatprep.subr.mxu0 0.0
    %124 = vmatpush2.msra.mxu0 0.0
    %125 = vmatprep.subr.mxu0 0.0
    %126 = vmatpush2.msra.mxu0 0.0
    %127 = vmatprep.mubr.f32.mxu0 0.0
    %128 = vmatmul.mubr.f32.gmra.mxu0 %v61
    %v129 = vpop.f32.mrf.mxu0
    %v130 = vadd.f32 0.0, %v129
    %v131 = vpop.f32.mrf.mxu0
    %v132 = vadd.f32 0.0, %v131
    %133 = vdwg.mxu0
    %s134 = scalar_lea.vmem [#allocation5], 16
    %v135 = vld [vmem:[%s134] sm:$0xff]
    %v136 = vld [vmem:[%s134 + $0x8] sm:$0xff]
    %s137 = scalar_lea.vmem [#allocation7], 16
    %v138 = vld [vmem:[%s137] sm:$0xff]
    %v139 = vld [vmem:[%s137 + $0x8] sm:$0xff]
    %140 = vmatprep.subr.mxu0 0.0
    %141 = vmatpush1.msra.mxu0 0.0
    %142 = vmatprep.subr.mxu0 0.0
    %143 = vmatpush1.msra.mxu0 0.0
    %144 = vmatprep.subr.mxu0 0.0
    %145 = vmatpush1.msra.mxu0 0.0
    %146 = vmatprep.subr.mxu0 0.0
    %147 = vmatpush1.msra.mxu0 0.0
    %148 = vmatprep.subr.mxu0 0.0
    %149 = vmatpush1.msra.mxu0 0.0
    %150 = vmatprep.subr.mxu0 0.0
    %151 = vmatpush1.msra.mxu0 0.0
    %152 = vmatprep.subr.mxu0 0.0
    %153 = vmatpush1.msra.mxu0 0.0
    %154 = vmatprep.subr.mxu0 0.0
    %155 = vmatpush1.msra.mxu0 0.0
    %156 = vmatprep.subr.mxu0 0.0
    %157 = vmatpush1.msra.mxu0 0.0
    %158 = vmatprep.subr.mxu0 0.0
    %159 = vmatpush1.msra.mxu0 0.0
    %160 = vmatprep.subr.mxu0 0.0
    %161 = vmatpush1.msra.mxu0 0.0
    %162 = vmatprep.subr.mxu0 0.0
    %163 = vmatpush1.msra.mxu0 0.0
    %164 = vmatprep.subr.mxu0 0.0
    %165 = vmatpush1.msra.mxu0 0.0
    %166 = vmatprep.subr.mxu0 0.0
    %167 = vmatpush1.msra.mxu0 0.0
    %168 = vmatprep.subr.mxu0 %v139
    %169 = vmatpush1.msra.mxu0 %v138
    %170 = vmatprep.subr.mxu0 %v136
    %171 = vmatpush1.msra.mxu0 %v135
    %172 = vmatprep.subr.mxu0 0.0
    %173 = vmatpush2.msra.mxu0 0.0
    %174 = vmatprep.subr.mxu0 0.0
    %175 = vmatpush2.msra.mxu0 0.0
    %176 = vmatprep.subr.mxu0 0.0
    %177 = vmatpush2.msra.mxu0 0.0
    %178 = vmatprep.subr.mxu0 0.0
    %179 = vmatpush2.msra.mxu0 0.0
    %180 = vmatprep.subr.mxu0 0.0
    %181 = vmatpush2.msra.mxu0 0.0
    %182 = vmatprep.subr.mxu0 0.0
    %183 = vmatpush2.msra.mxu0 0.0
    %184 = vmatprep.subr.mxu0 0.0
    %185 = vmatpush2.msra.mxu0 0.0
    %186 = vmatprep.subr.mxu0 0.0
    %187 = vmatpush2.msra.mxu0 0.0
    %188 = vmatprep.subr.mxu0 0.0
    %189 = vmatpush2.msra.mxu0 0.0
    %190 = vmatprep.subr.mxu0 0.0
    %191 = vmatpush2.msra.mxu0 0.0
    %192 = vmatprep.subr.mxu0 0.0
    %193 = vmatpush2.msra.mxu0 0.0
    %194 = vmatprep.subr.mxu0 0.0
    %195 = vmatpush2.msra.mxu0 0.0
    %196 = vmatprep.subr.mxu0 0.0
    %197 = vmatpush2.msra.mxu0 0.0
    %198 = vmatprep.subr.mxu0 0.0
    %199 = vmatpush2.msra.mxu0 0.0
    %200 = vmatprep.subr.mxu0 0.0
    %201 = vmatpush2.msra.mxu0 0.0
    %202 = vmatprep.subr.mxu0 0.0
    %203 = vmatpush2.msra.mxu0 0.0
    %204 = vmatprep.mubr.f32.mxu0 0.0
    %205 = vmatmul.mubr.f32.gmra.mxu0 %v61
    %v206 = vpop.f32.mrf.mxu0
    %v207 = vadd.f32 0.0, %v206
    %v208 = vpop.f32.mrf.mxu0
    %v209 = vadd.f32 0.0, %v208
    %210 = vdwg.mxu0
    %v211 = vadd.f32 %v130, %v132
    %212 = vadd.xlane.f32.xlu0 %v211
    %v213 = vpop.xlane.xlu0 %212
    %v214 = vadd.f32 %v207, %v209
    %215 = vadd.xlane.f32.xlu0 %v214
    %v216 = vpop.xlane.xlu0 %215
    %v217 = vadd.f32 %v213, %v216
    %v218 = vmul.f32 %v217, 0.001953125
    %v219 = vsub.f32 %v130, %v218
    %v220 = vsub.f32 %v132, %v218
    %v221 = vsub.f32 %v207, %v218
    %v222 = vsub.f32 %v209, %v218
    %v223 = vmul.f32 %v219, %v219
    %v224 = vmul.f32 %v220, %v220
    %v225 = vadd.f32 %v223, %v224
    %226 = vadd.xlane.f32.xlu0 %v225
    %v227 = vpop.xlane.xlu0 %226
    %v228 = vmul.f32 %v221, %v221
    %v229 = vmul.f32 %v222, %v222
    %v230 = vadd.f32 %v228, %v229
    %231 = vadd.xlane.f32.xlu0 %v230
    %v232 = vpop.xlane.xlu0 %231
    %v233 = vadd.f32 %v227, %v232
    %v234 = vmul.f32 %v233, 0.001953125
    %v235 = vadd.f32 %v234, 1e-05
    %v236 = vrsqrt.pop %v235
    %v237 = vmul.f32 %v219, %v236
    %v238 = vmul.f32 %v220, %v236
    %239 = vst [vmem:[#allocation8] sm:$0xff] %v237
    %240 = vst [vmem:[#allocation8 + $0x8] sm:$0xff] %v238
    %v241 = vmul.f32 %v221, %v236
    %v242 = vmul.f32 %v222, %v236
    %s243 = scalar_lea.vmem [#allocation8], 16
    %244 = vst [vmem:[%s243] sm:$0xff] %v241
    %245 = vst [vmem:[%s243 + $0x8] sm:$0xff] %v242
    // Predicated region
    $region26: #{tpu_custom_call.1} parent=1 // pred_check
      _
    $region27: #{tpu_custom_call.1} parent=1 // pred_check_branch
      %247 = sbr.rel (0) target = $region29
    $region28: #{tpu_custom_call.1} parent=1 // pred_region
      %s249 = ssub.s32 512, 512
      %250 = vsyncadd [#allocation4], %s249
      %s251 = sshll.u32 [#allocation8], 4
      %s252 = int_to_ptr.vmem [resolvable:$true] %s251
      %257 = dma.vmem_to_hbm [thread:$0]  %s252, 512, %s3, [#allocation4], 256, 256, 16
    $region29: #{tpu_custom_call.1} parent=1 // pred_fallthru
      _
    // Predicated region
    $region30: #{tpu_custom_call.1} parent=1 // pred_check
      _
    $region31: #{tpu_custom_call.1} parent=1 // pred_check_branch
      %259 = sbr.rel (0) target = $region33
    $region32: #{tpu_custom_call.1} parent=1 // pred_region
      %260 = dma.done [#allocation4], 512
    $region33: #{tpu_custom_call.1} parent=1 // pred_fallthru
      _
    %261 = vsyncpa [#allocation3], 1
    %262 = vsyncpa [#allocation6], 1
    %263 = vsyncpa [#allocation4], 1

</llo_original>
